<compile_context>
chip_gen: v7x
topology: tpu7x:2x2x1
jax: 0.10.0
libtpu: 0.0.40
codegen_flags: <defaults>
</compile_context>

<pallas_src>
import functools

import jax
import jax.numpy as jnp
from jax.experimental import pallas as pl
from jax.experimental.pallas import tpu as pltpu


# Leave headroom even on v7x (64 MiB physical VMEM per TensorCore).
_VMEM_LIMIT_BYTES = 48 * 1024 * 1024


def _round_up(x, m):
    return (x + m - 1) // m * m


def _split_rows(n_row_tiles):
    """Split the row reduction across 2 'parallel' partials when it divides."""
    n_splits = 2 if (n_row_tiles >= 2 and n_row_tiles % 2 == 0) else 1
    return n_splits, n_row_tiles // n_splits


# --------------------- kernel 1: lat = i_hyper^T @ x ----------------------- #
# Grid: (n_splits [parallel], row_tiles_per_split [arbitrary reduction]).
# The transpose is folded into the contraction (no i_hyper.T in HBM).

def _at_b_kernel(a_ref, x_ref, o_ref, acc_ref):
    @pl.when(pl.program_id(1) == 0)
    def _():
        acc_ref[...] = jnp.zeros_like(acc_ref)

    acc_ref[...] += jax.lax.dot_general(
        a_ref[...], x_ref[...],
        dimension_numbers=(((0,), (0,)), ((), ())),   # A^T @ X
        preferred_element_type=jnp.float32,
    )

    @pl.when(pl.program_id(1) == pl.num_programs(1) - 1)
    def _():
        o_ref[...] = acc_ref[...]


def _lat_from(a, x, tr):
    """lat = a.T @ x as f32, streamed in row tiles (partials summed outside)."""
    rows, h = a.shape
    d = x.shape[1]
    n_splits, n_per = _split_rows(rows // tr)

    partials = pl.pallas_call(
        _at_b_kernel,
        out_shape=jax.ShapeDtypeStruct((n_splits, h, d), jnp.float32),
        grid=(n_splits, n_per),
        in_specs=[
            pl.BlockSpec((tr, h), lambda s, r: (s * n_per + r, 0)),
            pl.BlockSpec((tr, d), lambda s, r: (s * n_per + r, 0)),
        ],
        out_specs=pl.BlockSpec((None, h, d), lambda s, r: (s, 0, 0)),
        scratch_shapes=[pltpu.VMEM((h, d), jnp.float32)],
        compiler_params=pltpu.CompilerParams(
            dimension_semantics=("parallel", "arbitrary"),
            vmem_limit_bytes=_VMEM_LIMIT_BYTES,
        ),
    )(a, x)
    return partials.sum(axis=0)


# ------- kernel 2: fused layer step  lat_next = i_hyper^T (i_hyper @ lat) --- #
# One streaming pass over i_hyper per intermediate layer.  Intermediate i_ret
# is never written to HBM (it is dead in the PyTorch module); only lat_next
# leaves the kernel.  lat stays resident in VMEM (constant block index).

def _lat_step_kernel(a_ref, lat_ref, latn_ref, acc_ref):
    @pl.when(pl.program_id(1) == 0)
    def _():
        acc_ref[...] = jnp.zeros_like(acc_ref)

    # t = i_hyper_tile @ lat  (cast back to compute dtype so numerics match
    # the unfused "store i_ret, re-read it" formulation exactly).
    t = jnp.dot(a_ref[...], lat_ref[...],
                preferred_element_type=jnp.float32).astype(a_ref.dtype)
    # lat_next += i_hyper_tile^T @ t   (transpose folded into the contraction)
    acc_ref[...] += jax.lax.dot_general(
        a_ref[...], t,
        dimension_numbers=(((0,), (0,)), ((), ())),
        preferred_element_type=jnp.float32,
    )

    @pl.when(pl.program_id(1) == pl.num_programs(1) - 1)
    def _():
        latn_ref[...] = acc_ref[...]


def _lat_step(a, lat, tr):
    rows, h = a.shape
    d = lat.shape[1]
    n_splits, n_per = _split_rows(rows // tr)

    partials = pl.pallas_call(
        _lat_step_kernel,
        out_shape=jax.ShapeDtypeStruct((n_splits, h, d), jnp.float32),
        grid=(n_splits, n_per),
        in_specs=[
            pl.BlockSpec((tr, h), lambda s, r: (s * n_per + r, 0)),
            pl.BlockSpec((h, d), lambda s, r: (0, 0)),   # lat resident in VMEM
        ],
        out_specs=pl.BlockSpec((None, h, d), lambda s, r: (s, 0, 0)),
        scratch_shapes=[pltpu.VMEM((h, d), jnp.float32)],
        compiler_params=pltpu.CompilerParams(
            dimension_semantics=("parallel", "arbitrary"),
            vmem_limit_bytes=_VMEM_LIMIT_BYTES,
        ),
    )(a, lat)
    return partials.sum(axis=0)


# ----------------- kernel 3: out = hyper @ lat (lat resident) -------------- #
# Used only for the final-layer i_ret and u_ret.  K = n_hyper fits in a single
# block so there is no accumulator scratch and no K grid axis.

def _rows_kernel(hyper_ref, lat_ref, o_ref):
    o_ref[...] = jnp.dot(
        hyper_ref[...], lat_ref[...], preferred_element_type=jnp.float32
    ).astype(o_ref.dtype)


def _rows_matmul(hyper, lat, tr, out_dtype):
    rows, h = hyper.shape
    d = lat.shape[1]
    # TODO(synk): add a K-tiled accumulator path if padded n_hyper ever grows
    # beyond what a VMEM-resident lat / single K block can hold.
    return pl.pallas_call(
        _rows_kernel,
        out_shape=jax.ShapeDtypeStruct((rows, d), out_dtype),
        grid=(rows // tr,),
        in_specs=[
            pl.BlockSpec((tr, h), lambda i: (i, 0)),
            pl.BlockSpec((h, d), lambda i: (0, 0)),   # lat resident across grid
        ],
        out_specs=pl.BlockSpec((tr, d), lambda i: (i, 0)),
        compiler_params=pltpu.CompilerParams(
            dimension_semantics=("parallel",),
            vmem_limit_bytes=_VMEM_LIMIT_BYTES,
        ),
    )(hyper, lat)


# ------------------------------ HGNN forward ------------------------------- #

@functools.partial(
    jax.jit, static_argnames=("n_hyper_layer", "compute_dtype", "row_tile"))
def hgnn_layer_forward(i_hyper, u_hyper, embeds, n_hyper_layer,
                       compute_dtype=jnp.float32, row_tile=512):
    """Pallas implementation of HGNNLayer.forward (whole loop under one jit)."""
    n_items, n_hyper = i_hyper.shape
    n_users = u_hyper.shape[0]
    dim = embeds.shape[1]
    out_dtype = embeds.dtype

    # Tile / padding geometry (handles non-tile-divisible shapes).
    tr = min(row_tile, _round_up(max(n_items, n_users), 8))
    tr = _round_up(tr, 8)
    i_pad = _round_up(n_items, tr)
    u_pad = _round_up(n_users, tr)
    h_pad = _round_up(n_hyper, 128)
    d_pad = _round_up(dim, 128)

    # Zero-pad and cast ONCE to the compute dtype (bf16 halves HBM traffic on
    # this memory-bound op; f32 accumulation is kept inside the kernels).
    i_h = jnp.zeros((i_pad, h_pad), compute_dtype).at[:n_items, :n_hyper].set(
        i_hyper.astype(compute_dtype))
    u_h = jnp.zeros((u_pad, h_pad), compute_dtype).at[:n_users, :n_hyper].set(
        u_hyper.astype(compute_dtype))
    x = jnp.zeros((i_pad, d_pad), compute_dtype).at[:n_items, :dim].set(
        embeds.astype(compute_dtype))

    # Layer 0 latent: lat = i_hyper.T @ embeds
    lat = _lat_from(i_h, x, tr)                               # f32 (h_pad, d_pad)

    # Intermediate layers: only lat flows forward (intermediate i_ret / u_ret
    # are dead in the PyTorch module), one streaming pass over i_hyper each.
    for _ in range(n_hyper_layer - 1):
        lat = _lat_step(i_h, lat.astype(compute_dtype), tr)   # f32 (h_pad, d_pad)

    # Final layer outputs.
    lat_c = lat.astype(compute_dtype)
    i_ret_pad = _rows_matmul(i_h, lat_c, tr, compute_dtype)
    u_ret_pad = _rows_matmul(u_h, lat_c, tr, compute_dtype)

    i_ret = i_ret_pad[:n_items, :dim].astype(out_dtype)
    u_ret = u_ret_pad[:n_users, :dim].astype(out_dtype)
    return u_ret, i_ret


def hgnn_layer_reference(i_hyper, u_hyper, embeds, n_hyper_layer):
    """Pure-JAX reference matching the PyTorch module."""
    i_ret = embeds
    u_ret = None
    for _ in range(n_hyper_layer):
        lat = i_hyper.T @ i_ret
        i_ret = i_hyper @ lat
        u_ret = u_hyper @ lat
    return u_ret, i_ret


# ---------------------------------- main ----------------------------------- #

if __name__ == "__main__":
    # Deliberately non-tile-aligned sizes to exercise the padding path.
    n_items, n_users, n_hyper, dim = 200, 96, 48, 64

    key = jax.random.PRNGKey(0)
    k1, k2, k3 = jax.random.split(key, 3)
    i_hyper = jax.random.normal(k1, (n_items, n_hyper), dtype=jnp.float32) * 0.05
    u_hyper = jax.random.normal(k2, (n_users, n_hyper), dtype=jnp.float32) * 0.05
    embeds = jax.random.normal(k3, (n_items, dim), dtype=jnp.float32)

    # f32 compute path: tight check, two layer counts (exercises the fused
    # intermediate-layer kernel zero and one-plus times).
    for n_layers in (1, 2, 3):
        u_ref, i_ref = hgnn_layer_reference(i_hyper, u_hyper, embeds, n_layers)
        u_ret, i_ret = hgnn_layer_forward(
            i_hyper, u_hyper, embeds, n_hyper_layer=n_layers,
            compute_dtype=jnp.float32)
        u_ret = jax.block_until_ready(u_ret)
        i_ret = jax.block_until_ready(i_ret)
        assert u_ret.shape == (n_users, dim) and i_ret.shape == (n_items, dim)
        assert jnp.allclose(u_ret, u_ref, rtol=1e-4, atol=1e-5), \
            f"f32 u_ret mismatch (layers={n_layers})"
        assert jnp.allclose(i_ret, i_ref, rtol=1e-4, atol=1e-5), \
            f"f32 i_ret mismatch (layers={n_layers})"

    # bf16 operands + f32 accumulation (halved HBM traffic): looser tolerance.
    u_ref, i_ref = hgnn_layer_reference(i_hyper, u_hyper, embeds, 2)
    u_bf, i_bf = hgnn_layer_forward(
        i_hyper, u_hyper, embeds, n_hyper_layer=2, compute_dtype=jnp.bfloat16)
    u_bf = jax.block_until_ready(u_bf)
    i_bf = jax.block_until_ready(i_bf)
    assert jnp.allclose(u_bf.astype(jnp.float32), u_ref, rtol=1e-1, atol=1e-2), \
        "bf16 u_ret mismatch"
    assert jnp.allclose(i_bf.astype(jnp.float32), i_ref, rtol=1e-1, atol=1e-2), \
        "bf16 i_ret mismatch"

    print("KERNEL_OK")
</pallas_src>

<mosaic_0001>
module attributes {stable_mosaic.version = 11 : i64} {
  func.func @_at_b_kernel(%arg0: i32, %arg1: i32, %arg2: memref<200x128xf32, #tpu.memory_space<vmem>>, %arg3: memref<200x128xf32, #tpu.memory_space<vmem>>, %arg4: memref<1x128x128xf32, #tpu.memory_space<vmem>>, %arg5: memref<128x128xf32, #tpu.memory_space<vmem>>) attributes {dimension_semantics = [#tpu.dimension_semantics<parallel>, #tpu.dimension_semantics<arbitrary>], iteration_bounds = array<i64: 1, 1>, scalar_prefetch = 0 : i64, scratch_operands = 1 : i64, tpu.core_type = #tpu.core_type<tc>, window_params = [{transform_indices = @transform_0, window_bounds = array<i64: 200, 128>}, {transform_indices = @transform_1, window_bounds = array<i64: 200, 128>}, {transform_indices = @transform_2, window_bounds = array<i64: 1, 128, 128>}]} {
    %c0_i32 = arith.constant 0 : i32
    %0 = arith.cmpi eq, %arg1, %c0_i32 : i32
    %1 = arith.extui %0 : i1 to i32
    %c0_i32_0 = arith.constant 0 : i32
    %2 = arith.cmpi ne, %1, %c0_i32_0 : i32
    scf.if %2 {
      %cst_10 = arith.constant 0.000000e+00 : f32
      %12 = vector.broadcast %cst_10 : f32 to vector<128x128xf32>
      %c0_11 = arith.constant 0 : index
      %c0_12 = arith.constant 0 : index
      %13 = vector.load %arg5[%c0_11, %c0_12] : memref<128x128xf32, #tpu.memory_space<vmem>>, vector<128x128xf32>
      tpu.vector_store %arg5[%c0_11, %c0_12], %12 {strides = array<i32>} : memref<128x128xf32, #tpu.memory_space<vmem>>, vector<128x128xf32>,
    } else {
    }
    %c0 = arith.constant 0 : index
    %c0_1 = arith.constant 0 : index
    %3 = vector.load %arg5[%c0, %c0_1] : memref<128x128xf32, #tpu.memory_space<vmem>>, vector<128x128xf32>
    %c0_2 = arith.constant 0 : index
    %c0_3 = arith.constant 0 : index
    %4 = vector.load %arg2[%c0_2, %c0_3] : memref<200x128xf32, #tpu.memory_space<vmem>>, vector<200x128xf32>
    %c0_4 = arith.constant 0 : index
    %c0_5 = arith.constant 0 : index
    %5 = vector.load %arg3[%c0_4, %c0_5] : memref<200x128xf32, #tpu.memory_space<vmem>>, vector<200x128xf32>
    %cst = arith.constant dense<0.000000e+00> : vector<128x128xf32>
    %6 = tpu.matmul %4, %5, %cst {dimension_numbers = #tpu.dot_dimension_numbers<[0], [0], [1], [1], [0, 1, 1, 1], [], []>} : vector<200x128xf32>, vector<200x128xf32>, vector<128x128xf32> -> vector<128x128xf32>
    %7 = arith.addf %3, %6 : vector<128x128xf32>
    %c0_6 = arith.constant 0 : index
    %c0_7 = arith.constant 0 : index
    %8 = vector.load %arg5[%c0_6, %c0_7] : memref<128x128xf32, #tpu.memory_space<vmem>>, vector<128x128xf32>
    tpu.vector_store %arg5[%c0_6, %c0_7], %7 {strides = array<i32>} : memref<128x128xf32, #tpu.memory_space<vmem>>, vector<128x128xf32>,
    %c0_i32_8 = arith.constant 0 : i32
    %9 = arith.cmpi eq, %arg1, %c0_i32_8 : i32
    %10 = arith.extui %9 : i1 to i32
    %c0_i32_9 = arith.constant 0 : i32
    %11 = arith.cmpi ne, %10, %c0_i32_9 : i32
    scf.if %11 {
      %c0_10 = arith.constant 0 : index
      %c0_11 = arith.constant 0 : index
      %12 = vector.load %arg5[%c0_10, %c0_11] : memref<128x128xf32, #tpu.memory_space<vmem>>, vector<128x128xf32>
      %c0_12 = arith.constant 0 : index
      %c0_13 = arith.constant 0 : index
      %c0_14 = arith.constant 0 : index
      %13 = vector.load %arg4[%c0_12, %c0_13, %c0_14] : memref<1x128x128xf32, #tpu.memory_space<vmem>>, vector<1x128x128xf32>
      %14 = vector.shape_cast %13 : vector<1x128x128xf32> to vector<128x128xf32>
      %15 = vector.shape_cast %12 : vector<128x128xf32> to vector<1x128x128xf32>
      tpu.vector_store %arg4[%c0_12, %c0_13, %c0_14], %15 {strides = array<i32>} : memref<1x128x128xf32, #tpu.memory_space<vmem>>, vector<1x128x128xf32>,
    } else {
    }
    return
  }
  func.func @transform_0(%arg0: i32, %arg1: i32) -> (i32, i32) {
    %c1_i32 = arith.constant 1 : i32
    %0 = arith.muli %arg0, %c1_i32 : i32
    %1 = arith.addi %0, %arg1 : i32
    %c0_i32 = arith.constant 0 : i32
    %c0_i32_0 = arith.constant 0 : i32
    return %1, %c0_i32 : i32, i32
  }
  func.func @transform_1(%arg0: i32, %arg1: i32) -> (i32, i32) {
    %c1_i32 = arith.constant 1 : i32
    %0 = arith.muli %arg0, %c1_i32 : i32
    %1 = arith.addi %0, %arg1 : i32
    %c0_i32 = arith.constant 0 : i32
    %c0_i32_0 = arith.constant 0 : i32
    return %1, %c0_i32 : i32, i32
  }
  func.func @transform_2(%arg0: i32, %arg1: i32) -> (i32, i32, i32) {
    %c0_i32 = arith.constant 0 : i32
    %c0_i32_0 = arith.constant 0 : i32
    %c0_i32_1 = arith.constant 0 : i32
    return %arg0, %c0_i32, %c0_i32_0 : i32, i32, i32
  }
}

module attributes {stable_mosaic.version = 11 : i64} {
  func.func @_rows_kernel(%arg0: i32, %arg1: memref<200x128xf32, #tpu.memory_space<vmem>>, %arg2: memref<128x128xf32, #tpu.memory_space<vmem>>, %arg3: memref<200x128xf32, #tpu.memory_space<vmem>>) attributes {dimension_semantics = [#tpu.dimension_semantics<parallel>], iteration_bounds = array<i64: 1>, scalar_prefetch = 0 : i64, scratch_operands = 0 : i64, tpu.core_type = #tpu.core_type<tc>, window_params = [{transform_indices = @transform_0, window_bounds = array<i64: 200, 128>}, {pipeline_mode = #tpu.pipeline_mode<synchronous>, transform_indices = @transform_1, window_bounds = array<i64: 128, 128>}, {transform_indices = @transform_2, window_bounds = array<i64: 200, 128>}]} {
    %c0 = arith.constant 0 : index
    %c0_0 = arith.constant 0 : index
    %0 = vector.load %arg1[%c0, %c0_0] : memref<200x128xf32, #tpu.memory_space<vmem>>, vector<200x128xf32>
    %c0_1 = arith.constant 0 : index
    %c0_2 = arith.constant 0 : index
    %1 = vector.load %arg2[%c0_1, %c0_2] : memref<128x128xf32, #tpu.memory_space<vmem>>, vector<128x128xf32>
    %cst = arith.constant dense<0.000000e+00> : vector<200x128xf32>
    %2 = tpu.matmul %0, %1, %cst {dimension_numbers = #tpu.dot_dimension_numbers<[1], [0], [0], [1], [0, 0, 1, 1], [], []>} : vector<200x128xf32>, vector<128x128xf32>, vector<200x128xf32> -> vector<200x128xf32>
    %c0_3 = arith.constant 0 : index
    %c0_4 = arith.constant 0 : index
    %3 = vector.load %arg3[%c0_3, %c0_4] : memref<200x128xf32, #tpu.memory_space<vmem>>, vector<200x128xf32>
    tpu.vector_store %arg3[%c0_3, %c0_4], %2 {strides = array<i32>} : memref<200x128xf32, #tpu.memory_space<vmem>>, vector<200x128xf32>,
    return
  }
  func.func @transform_0(%arg0: i32) -> (i32, i32) {
    %c0_i32 = arith.constant 0 : i32
    %c0_i32_0 = arith.constant 0 : i32
    return %arg0, %c0_i32 : i32, i32
  }
  func.func @transform_1(%arg0: i32) -> (i32, i32) {
    %c0_i32 = arith.constant 0 : i32
    %c0_i32_0 = arith.constant 0 : i32
    %c0_i32_1 = arith.constant 0 : i32
    return %c0_i32, %c0_i32_0 : i32, i32
  }
  func.func @transform_2(%arg0: i32) -> (i32, i32) {
    %c0_i32 = arith.constant 0 : i32
    %c0_i32_0 = arith.constant 0 : i32
    return %arg0, %c0_i32 : i32, i32
  }
}

</mosaic_0001>

<llo_original>
// kernel: hgnn_layer_forward.3
$region0: #{hgnn_layer_forward.3}
  #allocation0 [shape = 'u32[]', space=smem, size = 0x4, offset = 0x4, fixed_abs, tag = 'smem constant byte address 0x4 - core index']
  #allocation1 [shape = 'u32[144,128]{1,0:T(1,128)}', space=vmem, size = 0x12000, scoped, tag = 'internal scratch']
  #allocation2 [shape = 'f32[128,128]{1,0:T(8,128)}', space=vmem, size = 0x10000, scoped, tag = 'scratch operand']
  %s0 = inlined_call_operand.vmem [shape: f32[200,128], index: 0, kind: input, shape index: {}]
  %s1 = inlined_call_operand.vmem [shape: f32[200,128], index: 1, kind: input, shape index: {}]
  %s2 = inlined_call_operand.vmem [shape: f32[1,128,128], index: 2, kind: output, shape index: {}]
  %s3 = sld [smem:[#allocation0]]
  $region26: #{hgnn_layer_forward.3} parent=0
    _
  %s5 = ssub.s32 1, %s3
  %s6 = scalar_select 0, %s5, %s3
  // Predicated region
  $region2: #{hgnn_layer_forward.3} parent=0 // pred_check
    _
  $region3: #{hgnn_layer_forward.3} parent=0 // pred_check_branch
    %8 = sbr.rel (0) target = $region5
  $region4: #{hgnn_layer_forward.3} parent=0 // pred_region
    %s9 = sadd.s32 0, 0
    %s10 = smul.u32 25, %s9
    %p11 = scmp.lt.s32.totalorder %s10, 24
    %s12 = scalar_select %p11, %s10, 24
    %s13 = smul.addr %s12, 8
    %s14 = scalar_lea.vmem %s0, %s13
    %s15 = sadd.s32 0, 0
    %s16 = smul.u32 25, %s15
  $region5: #{hgnn_layer_forward.3} parent=0 // pred_fallthru
    _
  // Predicated region
  $region6: #{hgnn_layer_forward.3} parent=0 // pred_check
    _
  $region7: #{hgnn_layer_forward.3} parent=0 // pred_check_branch
    %18 = sbr.rel (0) target = $region9
  $region8: #{hgnn_layer_forward.3} parent=0 // pred_region
    %s19 = sadd.s32 0, 0
    %s20 = smul.u32 25, %s19
    %p21 = scmp.lt.s32.totalorder %s20, 24
    %s22 = scalar_select %p21, %s20, 24
    %s23 = smul.addr %s22, 8
    %s24 = scalar_lea.vmem %s1, %s23
    %s25 = sadd.s32 0, 0
    %s26 = smul.u32 25, %s25
  $region9: #{hgnn_layer_forward.3} parent=0 // pred_fallthru
    _
  %s27 = sadd.s32 0, 0
  %s28 = smul.u32 25, %s27
  %p29 = scmp.lt.s32.totalorder %s28, 24
  %s30 = scalar_select %p29, %s28, 24
  %s31 = smul.addr %s30, 8
  %s32 = scalar_lea.vmem %s0, %s31
  %s33 = sadd.s32 0, 0
  %s34 = smul.u32 25, %s33
  %p35 = scmp.lt.s32.totalorder %s34, 24
  %s36 = scalar_select %p35, %s34, 24
  %s37 = smul.addr %s36, 8
  %s38 = scalar_lea.vmem %s1, %s37
  %s39 = sadd.s32 0, 0
  %s40 = smul.u32 25, %s39
  %p41 = scmp.lt.s32.totalorder %s40, 24
  %s42 = scalar_select %p41, %s40, 24
  %s43 = smul.addr %s42, 8
  %s44 = scalar_lea.vmem %s0, %s43
  %s45 = sadd.s32 0, 0
  %s46 = smul.u32 25, %s45
  %s47 = sadd.s32 0, 0
  %s48 = smul.u32 25, %s47
  %p49 = scmp.lt.s32.totalorder %s48, 24
  %s50 = scalar_select %p49, %s48, 24
  %s51 = smul.addr %s50, 8
  %s52 = scalar_lea.vmem %s1, %s51
  %s53 = sadd.s32 0, 0
  %s54 = smul.u32 25, %s53
  %p55 = scmp.eq.s32.totalorder 0, 0
  // Predicated region
  $region10: #{hgnn_layer_forward.3} parent=0 // pred_check
    %p56 = pneg %p55
  $region11: #{hgnn_layer_forward.3} parent=0 // pred_check_branch
    %58 = sbr.rel (%p56) target = $region13
  $region12: #{hgnn_layer_forward.3} parent=0 // pred_region
    %59 = vst [vmem:[#allocation2] sm:$0xff] 0.0
    %60 = vst [vmem:[#allocation2 + $0x8] sm:$0xff] 0.0
    %61 = vst [vmem:[#allocation2 + $0x10] sm:$0xff] 0.0
    %62 = vst [vmem:[#allocation2 + $0x18] sm:$0xff] 0.0
    %63 = vst [vmem:[#allocation2 + $0x20] sm:$0xff] 0.0
    %64 = vst [vmem:[#allocation2 + $0x28] sm:$0xff] 0.0
    %65 = vst [vmem:[#allocation2 + $0x30] sm:$0xff] 0.0
    %66 = vst [vmem:[#allocation2 + $0x38] sm:$0xff] 0.0
    %67 = vst [vmem:[#allocation2 + $0x40] sm:$0xff] 0.0
    %68 = vst [vmem:[#allocation2 + $0x48] sm:$0xff] 0.0
    %69 = vst [vmem:[#allocation2 + $0x50] sm:$0xff] 0.0
    %70 = vst [vmem:[#allocation2 + $0x58] sm:$0xff] 0.0
    %71 = vst [vmem:[#allocation2 + $0x60] sm:$0xff] 0.0
    %72 = vst [vmem:[#allocation2 + $0x68] sm:$0xff] 0.0
    %73 = vst [vmem:[#allocation2 + $0x70] sm:$0xff] 0.0
    %74 = vst [vmem:[#allocation2 + $0x78] sm:$0xff] 0.0
  $region13: #{hgnn_layer_forward.3} parent=0 // pred_fallthru
    _
  %v75 = vld [vmem:[#allocation2] sm:$0xff]
  %v76 = vld [vmem:[#allocation2 + $0x8] sm:$0xff]
  %v77 = vld [vmem:[#allocation2 + $0x10] sm:$0xff]
  %v78 = vld [vmem:[#allocation2 + $0x18] sm:$0xff]
  %v79 = vld [vmem:[#allocation2 + $0x20] sm:$0xff]
  %v80 = vld [vmem:[#allocation2 + $0x28] sm:$0xff]
  %v81 = vld [vmem:[#allocation2 + $0x30] sm:$0xff]
  %v82 = vld [vmem:[#allocation2 + $0x38] sm:$0xff]
  %v83 = vld [vmem:[#allocation2 + $0x40] sm:$0xff]
  %v84 = vld [vmem:[#allocation2 + $0x48] sm:$0xff]
  %v85 = vld [vmem:[#allocation2 + $0x50] sm:$0xff]
  %v86 = vld [vmem:[#allocation2 + $0x58] sm:$0xff]
  %v87 = vld [vmem:[#allocation2 + $0x60] sm:$0xff]
  %v88 = vld [vmem:[#allocation2 + $0x68] sm:$0xff]
  %v89 = vld [vmem:[#allocation2 + $0x70] sm:$0xff]
  %v90 = vld [vmem:[#allocation2 + $0x78] sm:$0xff]
  %v91 = vld [vmem:[%s44] sm:$0xff]
  %v92 = vld [vmem:[%s44 + $0x8] sm:$0xff]
  %v93 = vld [vmem:[%s44 + $0x10] sm:$0xff]
  %v94 = vld [vmem:[%s44 + $0x18] sm:$0xff]
  %v95 = vld [vmem:[%s44 + $0x20] sm:$0xff]
  %v96 = vld [vmem:[%s44 + $0x28] sm:$0xff]
  %v97 = vld [vmem:[%s44 + $0x30] sm:$0xff]
  %v98 = vld [vmem:[%s44 + $0x38] sm:$0xff]
  %v99 = vld [vmem:[%s44 + $0x40] sm:$0xff]
  %v100 = vld [vmem:[%s44 + $0x48] sm:$0xff]
  %v101 = vld [vmem:[%s44 + $0x50] sm:$0xff]
  %v102 = vld [vmem:[%s44 + $0x58] sm:$0xff]
  %v103 = vld [vmem:[%s44 + $0x60] sm:$0xff]
  %v104 = vld [vmem:[%s44 + $0x68] sm:$0xff]
  %v105 = vld [vmem:[%s44 + $0x70] sm:$0xff]
  %v106 = vld [vmem:[%s44 + $0x78] sm:$0xff]
  %v107 = vld [vmem:[%s44 + $0x80] sm:$0xff]
  %v108 = vld [vmem:[%s44 + $0x88] sm:$0xff]
  %v109 = vld [vmem:[%s44 + $0x90] sm:$0xff]
  %v110 = vld [vmem:[%s44 + $0x98] sm:$0xff]
  %v111 = vld [vmem:[%s44 + $0xa0] sm:$0xff]
  %v112 = vld [vmem:[%s44 + $0xa8] sm:$0xff]
  %v113 = vld [vmem:[%s44 + $0xb0] sm:$0xff]
  %v114 = vld [vmem:[%s44 + $0xb8] sm:$0xff]
  %v115 = vld [vmem:[%s44 + $0xc0] sm:$0xff]
  %v116 = vld [vmem:[%s52] sm:$0xff]
  %v117 = vld [vmem:[%s52 + $0x8] sm:$0xff]
  %v118 = vld [vmem:[%s52 + $0x10] sm:$0xff]
  %v119 = vld [vmem:[%s52 + $0x18] sm:$0xff]
  %v120 = vld [vmem:[%s52 + $0x20] sm:$0xff]
  %v121 = vld [vmem:[%s52 + $0x28] sm:$0xff]
  %v122 = vld [vmem:[%s52 + $0x30] sm:$0xff]
  %v123 = vld [vmem:[%s52 + $0x38] sm:$0xff]
  %v124 = vld [vmem:[%s52 + $0x40] sm:$0xff]
  %v125 = vld [vmem:[%s52 + $0x48] sm:$0xff]
  %v126 = vld [vmem:[%s52 + $0x50] sm:$0xff]
  %v127 = vld [vmem:[%s52 + $0x58] sm:$0xff]
  %v128 = vld [vmem:[%s52 + $0x60] sm:$0xff]
  %v129 = vld [vmem:[%s52 + $0x68] sm:$0xff]
  %v130 = vld [vmem:[%s52 + $0x70] sm:$0xff]
  %v131 = vld [vmem:[%s52 + $0x78] sm:$0xff]
  %v132 = vld [vmem:[%s52 + $0x80] sm:$0xff]
  %v133 = vld [vmem:[%s52 + $0x88] sm:$0xff]
  %v134 = vld [vmem:[%s52 + $0x90] sm:$0xff]
  %v135 = vld [vmem:[%s52 + $0x98] sm:$0xff]
  %v136 = vld [vmem:[%s52 + $0xa0] sm:$0xff]
  %v137 = vld [vmem:[%s52 + $0xa8] sm:$0xff]
  %v138 = vld [vmem:[%s52 + $0xb0] sm:$0xff]
  %v139 = vld [vmem:[%s52 + $0xb8] sm:$0xff]
  %v140 = vld [vmem:[%s52 + $0xc0] sm:$0xff]
  %141 = vxpose.xlu0.b32.start [1/16] %v91, 128
  %142 = vxpose.xlu0.b32.cont [2/16] %v92, 128
  %143 = vxpose.xlu0.b32.cont [3/16] %v93, 128
  %144 = vxpose.xlu0.b32.cont [4/16] %v94, 128
  %145 = vxpose.xlu0.b32.cont [5/16] %v95, 128
  %146 = vxpose.xlu0.b32.cont [6/16] %v96, 128
  %147 = vxpose.xlu0.b32.cont [7/16] %v97, 128
  %148 = vxpose.xlu0.b32.cont [8/16] %v98, 128
  %149 = vxpose.xlu0.b32.cont [9/16] %v99, 128
  %150 = vxpose.xlu0.b32.cont [10/16] %v100, 128
  %151 = vxpose.xlu0.b32.cont [11/16] %v101, 128
  %152 = vxpose.xlu0.b32.cont [12/16] %v102, 128
  %153 = vxpose.xlu0.b32.cont [13/16] %v103, 128
  %154 = vxpose.xlu0.b32.cont [14/16] %v104, 128
  %155 = vxpose.xlu0.b32.cont [15/16] %v105, 128
  %156 = vxpose.xlu0.b32.end [16/16] %v106, 128
  %v157 = vpop.trf.xlu0
  %v158 = vpop.trf.xlu0
  %v159 = vpop.trf.xlu0
  %v160 = vpop.trf.xlu0
  %v161 = vpop.trf.xlu0
  %v162 = vpop.trf.xlu0
  %v163 = vpop.trf.xlu0
  %v164 = vpop.trf.xlu0
  %v165 = vpop.trf.xlu0
  %v166 = vpop.trf.xlu0
  %v167 = vpop.trf.xlu0
  %v168 = vpop.trf.xlu0
  %v169 = vpop.trf.xlu0
  %v170 = vpop.trf.xlu0
  %v171 = vpop.trf.xlu0
  %v172 = vpop.trf.xlu0
  %173 = vxpose.xlu0.b32.start [1/16] %v107, 128
  %174 = vxpose.xlu0.b32.cont [2/16] %v108, 128
  %175 = vxpose.xlu0.b32.cont [3/16] %v109, 128
  %176 = vxpose.xlu0.b32.cont [4/16] %v110, 128
  %177 = vxpose.xlu0.b32.cont [5/16] %v111, 128
  %178 = vxpose.xlu0.b32.cont [6/16] %v112, 128
  %179 = vxpose.xlu0.b32.cont [7/16] %v113, 128
  %180 = vxpose.xlu0.b32.cont [8/16] %v114, 128
  %181 = vxpose.xlu0.b32.cont [9/16] %v115, 128
  %182 = vxpose.xlu0.b32.cont [10/16] 0.0, 128
  %183 = vxpose.xlu0.b32.cont [11/16] 0.0, 128
  %184 = vxpose.xlu0.b32.cont [12/16] 0.0, 128
  %185 = vxpose.xlu0.b32.cont [13/16] 0.0, 128
  %186 = vxpose.xlu0.b32.cont [14/16] 0.0, 128
  %187 = vxpose.xlu0.b32.cont [15/16] 0.0, 128
  %188 = vxpose.xlu0.b32.end [16/16] 0.0, 128
  %v189 = vpop.trf.xlu0
  %v190 = vpop.trf.xlu0
  %v191 = vpop.trf.xlu0
  %v192 = vpop.trf.xlu0
  %v193 = vpop.trf.xlu0
  %v194 = vpop.trf.xlu0
  %v195 = vpop.trf.xlu0
  %v196 = vpop.trf.xlu0
  %v197 = vpop.trf.xlu0
  %v198 = vpop.trf.xlu0
  %v199 = vpop.trf.xlu0
  %v200 = vpop.trf.xlu0
  %v201 = vpop.trf.xlu0
  %v202 = vpop.trf.xlu0
  %v203 = vpop.trf.xlu0
  %v204 = vpop.trf.xlu0
  %vm205 = vcmask 588800
  %v207 = vsel %vm205, %v189, 0
  %v210 = vsel %vm205, %v190, 0
  %v213 = vsel %vm205, %v191, 0
  %v216 = vsel %vm205, %v192, 0
  %v219 = vsel %vm205, %v193, 0
  %v222 = vsel %vm205, %v194, 0
  %v225 = vsel %vm205, %v195, 0
  %v228 = vsel %vm205, %v196, 0
  %v231 = vsel %vm205, %v197, 0
  %v234 = vsel %vm205, %v198, 0
  %v237 = vsel %vm205, %v199, 0
  %v240 = vsel %vm205, %v200, 0
  %v243 = vsel %vm205, %v201, 0
  %v246 = vsel %vm205, %v202, 0
  %v249 = vsel %vm205, %v203, 0
  %v252 = vsel %vm205, %v204, 0
  %254 = vmatprep.subr.mxu0 0.0
  %255 = vmatpush1.msra.mxu0 %v116
  %256 = vmatprep.subr.mxu0 0.0
  %257 = vmatpush1.msra.mxu0 %v117
  %258 = vmatprep.subr.mxu0 0.0
  %259 = vmatpush1.msra.mxu0 %v118
  %260 = vmatprep.subr.mxu0 0.0
  %261 = vmatpush1.msra.mxu0 %v119
  %262 = vmatprep.subr.mxu0 0.0
  %263 = vmatpush1.msra.mxu0 %v120
  %264 = vmatprep.subr.mxu0 0.0
  %265 = vmatpush1.msra.mxu0 %v121
  %266 = vmatprep.subr.mxu0 0.0
  %267 = vmatpush1.msra.mxu0 %v122
  %268 = vmatprep.subr.mxu0 0.0
  %269 = vmatpush1.msra.mxu0 %v123
  %270 = vmatprep.subr.mxu0 0.0
  %271 = vmatpush1.msra.mxu0 %v124
  %272 = vmatprep.subr.mxu0 0.0
  %273 = vmatpush1.msra.mxu0 %v125
  %274 = vmatprep.subr.mxu0 0.0
  %275 = vmatpush1.msra.mxu0 %v126
  %276 = vmatprep.subr.mxu0 0.0
  %277 = vmatpush1.msra.mxu0 %v127
  %278 = vmatprep.subr.mxu0 0.0
  %279 = vmatpush1.msra.mxu0 %v128
  %280 = vmatprep.subr.mxu0 0.0
  %281 = vmatpush1.msra.mxu0 %v129
  %282 = vmatprep.subr.mxu0 0.0
  %283 = vmatpush1.msra.mxu0 %v130
  %284 = vmatprep.subr.mxu0 0.0
  %285 = vmatpush1.msra.mxu0 %v131
  %286 = vmatprep.subr.mxu0 0.0
  %287 = vmatpush1.msra.mxu0 %v132
  %288 = vmatprep.subr.mxu0 0.0
  %289 = vmatpush1.msra.mxu0 %v133
  %290 = vmatprep.subr.mxu0 0.0
  %291 = vmatpush1.msra.mxu0 %v134
  %292 = vmatprep.subr.mxu0 0.0
  %293 = vmatpush1.msra.mxu0 %v135
  %294 = vmatprep.subr.mxu0 0.0
  %295 = vmatpush1.msra.mxu0 %v136
  %296 = vmatprep.subr.mxu0 0.0
  %297 = vmatpush1.msra.mxu0 %v137
  %298 = vmatprep.subr.mxu0 0.0
  %299 = vmatpush1.msra.mxu0 %v138
  %300 = vmatprep.subr.mxu0 0.0
  %301 = vmatpush1.msra.mxu0 %v139
  %302 = vmatprep.subr.mxu0 0.0
  %303 = vmatpush1.msra.mxu0 %v140
  %304 = vmatprep.subr.mxu0 0.0
  %305 = vmatpush1.msra.mxu0 0.0
  %306 = vmatprep.subr.mxu0 0.0
  %307 = vmatpush1.msra.mxu0 0.0
  %308 = vmatprep.subr.mxu0 0.0
  %309 = vmatpush1.msra.mxu0 0.0
  %310 = vmatprep.subr.mxu0 0.0
  %311 = vmatpush1.msra.mxu0 0.0
  %312 = vmatprep.subr.mxu0 0.0
  %313 = vmatpush1.msra.mxu0 0.0
  %314 = vmatprep.subr.mxu0 0.0
  %315 = vmatpush1.msra.mxu0 0.0
  %316 = vmatprep.subr.mxu0 0.0
  %317 = vmatpush1.msra.mxu0 0.0
  %318 = vmatprep.mubr.f32.mxu0 %v207
  %319 = vmatmul.mubr.f32.gmra.mrb[0].mxu0 %v157
  %v320 = vpop.f32.mrb[0].mxu0
  %v321 = vadd.f32 0.0, %v320
  %v322 = vpop.f32.mrb[0].mxu0
  %323 = vmatprep.mubr.f32.mxu0 %v210
  %324 = vmatmul.mubr.f32.gmra.mrb[0].mxu0 %v158
  %v325 = vpop.f32.mrb[0].mxu0
  %v326 = vadd.f32 0.0, %v325
  %v327 = vpop.f32.mrb[0].mxu0
  %328 = vmatprep.mubr.f32.mxu0 %v213
  %329 = vmatmul.mubr.f32.gmra.mrb[0].mxu0 %v159
  %v330 = vpop.f32.mrb[0].mxu0
  %v331 = vadd.f32 0.0, %v330
  %v332 = vpop.f32.mrb[0].mxu0
  %333 = vmatprep.mubr.f32.mxu0 %v216
  %334 = vmatmul.mubr.f32.gmra.mrb[0].mxu0 %v160
  %v335 = vpop.f32.mrb[0].mxu0
  %v336 = vadd.f32 0.0, %v335
  %v337 = vpop.f32.mrb[0].mxu0
  %338 = vmatprep.mubr.f32.mxu0 %v219
  %339 = vmatmul.mubr.f32.gmra.mrb[0].mxu0 %v161
  %v340 = vpop.f32.mrb[0].mxu0
  %v341 = vadd.f32 0.0, %v340
  %v342 = vpop.f32.mrb[0].mxu0
  %343 = vmatprep.mubr.f32.mxu0 %v222
  %344 = vmatmul.mubr.f32.gmra.mrb[0].mxu0 %v162
  %v345 = vpop.f32.mrb[0].mxu0
  %v346 = vadd.f32 0.0, %v345
  %v347 = vpop.f32.mrb[0].mxu0
  %348 = vmatprep.mubr.f32.mxu0 %v225
  %349 = vmatmul.mubr.f32.gmra.mrb[0].mxu0 %v163
  %v350 = vpop.f32.mrb[0].mxu0
  %v351 = vadd.f32 0.0, %v350
  %v352 = vpop.f32.mrb[0].mxu0
  %353 = vmatprep.mubr.f32.mxu0 %v228
  %354 = vmatmul.mubr.f32.gmra.mrb[0].mxu0 %v164
  %v355 = vpop.f32.mrb[0].mxu0
  %v356 = vadd.f32 0.0, %v355
  %v357 = vpop.f32.mrb[0].mxu0
  %358 = vmatprep.mubr.f32.mxu0 %v231
  %359 = vmatmul.mubr.f32.gmra.mrb[0].mxu0 %v165
  %v360 = vpop.f32.mrb[0].mxu0
  %v361 = vadd.f32 0.0, %v360
  %v362 = vpop.f32.mrb[0].mxu0
  %363 = vmatprep.mubr.f32.mxu0 %v234
  %364 = vmatmul.mubr.f32.gmra.mrb[0].mxu0 %v166
  %v365 = vpop.f32.mrb[0].mxu0
  %v366 = vadd.f32 0.0, %v365
  %v367 = vpop.f32.mrb[0].mxu0
  %368 = vmatprep.mubr.f32.mxu0 %v237
  %369 = vmatmul.mubr.f32.gmra.mrb[0].mxu0 %v167
  %v370 = vpop.f32.mrb[0].mxu0
  %v371 = vadd.f32 0.0, %v370
  %v372 = vpop.f32.mrb[0].mxu0
  %373 = vmatprep.mubr.f32.mxu0 %v240
  %374 = vmatmul.mubr.f32.gmra.mrb[0].mxu0 %v168
  %v375 = vpop.f32.mrb[0].mxu0
  %v376 = vadd.f32 0.0, %v375
  %v377 = vpop.f32.mrb[0].mxu0
  %378 = vmatprep.mubr.f32.mxu0 %v243
  %379 = vmatmul.mubr.f32.gmra.mrb[0].mxu0 %v169
  %v380 = vpop.f32.mrb[0].mxu0
  %v381 = vadd.f32 0.0, %v380
  %v382 = vpop.f32.mrb[0].mxu0
  %383 = vmatprep.mubr.f32.mxu0 %v246
  %384 = vmatmul.mubr.f32.gmra.mrb[0].mxu0 %v170
  %v385 = vpop.f32.mrb[0].mxu0
  %v386 = vadd.f32 0.0, %v385
  %v387 = vpop.f32.mrb[0].mxu0
  %388 = vmatprep.mubr.f32.mxu0 %v249
  %389 = vmatmul.mubr.f32.gmra.mrb[0].mxu0 %v171
  %v390 = vpop.f32.mrb[0].mxu0
  %v391 = vadd.f32 0.0, %v390
  %v392 = vpop.f32.mrb[0].mxu0
  %393 = vmatprep.mubr.f32.mxu0 %v252
  %394 = vmatmul.mubr.f32.gmra.mrb[0].mxu0 %v172
  %v395 = vpop.f32.mrb[0].mxu0
  %v396 = vadd.f32 0.0, %v395
  %v397 = vpop.f32.mrb[0].mxu0
  %398 = vdwg.mxu0
  %v399 = vadd.f32 %v75, %v321
  %v400 = vadd.f32 %v76, %v326
  %v401 = vadd.f32 %v77, %v331
  %v402 = vadd.f32 %v78, %v336
  %v403 = vadd.f32 %v79, %v341
  %v404 = vadd.f32 %v80, %v346
  %v405 = vadd.f32 %v81, %v351
  %v406 = vadd.f32 %v82, %v356
  %v407 = vadd.f32 %v83, %v361
  %v408 = vadd.f32 %v84, %v366
  %v409 = vadd.f32 %v85, %v371
  %v410 = vadd.f32 %v86, %v376
  %v411 = vadd.f32 %v87, %v381
  %v412 = vadd.f32 %v88, %v386
  %v413 = vadd.f32 %v89, %v391
  %v414 = vadd.f32 %v90, %v396
  %415 = vst [vmem:[#allocation2] sm:$0xff] %v399
  %416 = vst [vmem:[#allocation2 + $0x8] sm:$0xff] %v400
  %417 = vst [vmem:[#allocation2 + $0x10] sm:$0xff] %v401
  %418 = vst [vmem:[#allocation2 + $0x18] sm:$0xff] %v402
  %419 = vst [vmem:[#allocation2 + $0x20] sm:$0xff] %v403
  %420 = vst [vmem:[#allocation2 + $0x28] sm:$0xff] %v404
  %421 = vst [vmem:[#allocation2 + $0x30] sm:$0xff] %v405
  %422 = vst [vmem:[#allocation2 + $0x38] sm:$0xff] %v406
  %423 = vst [vmem:[#allocation2 + $0x40] sm:$0xff] %v407
  %424 = vst [vmem:[#allocation2 + $0x48] sm:$0xff] %v408
  %425 = vst [vmem:[#allocation2 + $0x50] sm:$0xff] %v409
  %426 = vst [vmem:[#allocation2 + $0x58] sm:$0xff] %v410
  %427 = vst [vmem:[#allocation2 + $0x60] sm:$0xff] %v411
  %428 = vst [vmem:[#allocation2 + $0x68] sm:$0xff] %v412
  %429 = vst [vmem:[#allocation2 + $0x70] sm:$0xff] %v413
  %430 = vst [vmem:[#allocation2 + $0x78] sm:$0xff] %v414
  // Predicated region
  $region14: #{hgnn_layer_forward.3} parent=0 // pred_check
    %p431 = pneg %p55
  $region15: #{hgnn_layer_forward.3} parent=0 // pred_check_branch
    %433 = sbr.rel (%p431) target = $region17
  $region16: #{hgnn_layer_forward.3} parent=0 // pred_region
    %v434 = vld [vmem:[#allocation2] sm:$0xff]
    %v435 = vld [vmem:[#allocation2 + $0x8] sm:$0xff]
    %v436 = vld [vmem:[#allocation2 + $0x10] sm:$0xff]
    %v437 = vld [vmem:[#allocation2 + $0x18] sm:$0xff]
    %v438 = vld [vmem:[#allocation2 + $0x20] sm:$0xff]
    %v439 = vld [vmem:[#allocation2 + $0x28] sm:$0xff]
    %v440 = vld [vmem:[#allocation2 + $0x30] sm:$0xff]
    %v441 = vld [vmem:[#allocation2 + $0x38] sm:$0xff]
    %v442 = vld [vmem:[#allocation2 + $0x40] sm:$0xff]
    %v443 = vld [vmem:[#allocation2 + $0x48] sm:$0xff]
    %v444 = vld [vmem:[#allocation2 + $0x50] sm:$0xff]
    %v445 = vld [vmem:[#allocation2 + $0x58] sm:$0xff]
    %v446 = vld [vmem:[#allocation2 + $0x60] sm:$0xff]
    %v447 = vld [vmem:[#allocation2 + $0x68] sm:$0xff]
    %v448 = vld [vmem:[#allocation2 + $0x70] sm:$0xff]
    %v449 = vld [vmem:[#allocation2 + $0x78] sm:$0xff]
    %450 = vst [vmem:[%s2] sm:$0xff] %v434
    %451 = vst [vmem:[%s2 + $0x8] sm:$0xff] %v435
    %452 = vst [vmem:[%s2 + $0x10] sm:$0xff] %v436
    %453 = vst [vmem:[%s2 + $0x18] sm:$0xff] %v437
    %454 = vst [vmem:[%s2 + $0x20] sm:$0xff] %v438
    %455 = vst [vmem:[%s2 + $0x28] sm:$0xff] %v439
    %456 = vst [vmem:[%s2 + $0x30] sm:$0xff] %v440
    %457 = vst [vmem:[%s2 + $0x38] sm:$0xff] %v441
    %458 = vst [vmem:[%s2 + $0x40] sm:$0xff] %v442
    %459 = vst [vmem:[%s2 + $0x48] sm:$0xff] %v443
    %460 = vst [vmem:[%s2 + $0x50] sm:$0xff] %v444
    %461 = vst [vmem:[%s2 + $0x58] sm:$0xff] %v445
    %462 = vst [vmem:[%s2 + $0x60] sm:$0xff] %v446
    %463 = vst [vmem:[%s2 + $0x68] sm:$0xff] %v447
    %464 = vst [vmem:[%s2 + $0x70] sm:$0xff] %v448
    %465 = vst [vmem:[%s2 + $0x78] sm:$0xff] %v449
  $region17: #{hgnn_layer_forward.3} parent=0 // pred_fallthru
    _
  // Predicated region
  $region18: #{hgnn_layer_forward.3} parent=0 // pred_check
    _
  $region19: #{hgnn_layer_forward.3} parent=0 // pred_check_branch
    %467 = sbr.rel (0) target = $region21
  $region20: #{hgnn_layer_forward.3} parent=0 // pred_region
    _
  $region21: #{hgnn_layer_forward.3} parent=0 // pred_fallthru
    _
  // Predicated region
  $region22: #{hgnn_layer_forward.3} parent=0 // pred_check
    _
  $region23: #{hgnn_layer_forward.3} parent=0 // pred_check_branch
    %469 = sbr.rel (0) target = $region25
  $region24: #{hgnn_layer_forward.3} parent=0 // pred_region
    _
  $region25: #{hgnn_layer_forward.3} parent=0 // pred_fallthru
    _

// kernel: hgnn_layer_forward.4
$region0: #{hgnn_layer_forward.4}
  #allocation0 [shape = 'u32[]', space=smem, size = 0x4, offset = 0x4, fixed_abs, tag = 'smem constant byte address 0x4 - core index']
  #allocation1 [shape = 'u32[144,128]{1,0:T(1,128)}', space=vmem, size = 0x12000, scoped, tag = 'internal scratch']
  %s0 = inlined_call_operand.vmem [shape: f32[200,128], index: 0, kind: input, shape index: {}]
  %s1 = inlined_call_operand.vmem [shape: f32[128,128], index: 1, kind: input, shape index: {}]
  %s2 = inlined_call_operand.vmem [shape: f32[200,128], index: 2, kind: output, shape index: {}]
  %s3 = sld [smem:[#allocation0]]
  $region18: #{hgnn_layer_forward.4} parent=0
    _
  %s5 = ssub.s32 1, %s3
  %s6 = scalar_select 0, %s5, %s3
  // Predicated region
  $region2: #{hgnn_layer_forward.4} parent=0 // pred_check
    _
  $region3: #{hgnn_layer_forward.4} parent=0 // pred_check_branch
    %8 = sbr.rel (0) target = $region5
  $region4: #{hgnn_layer_forward.4} parent=0 // pred_region
    _
  $region5: #{hgnn_layer_forward.4} parent=0 // pred_fallthru
    _
  // Predicated region
  $region6: #{hgnn_layer_forward.4} parent=0 // pred_check
    _
  $region7: #{hgnn_layer_forward.4} parent=0 // pred_check_branch
    %10 = sbr.rel (0) target = $region9
  $region8: #{hgnn_layer_forward.4} parent=0 // pred_region
    _
  $region9: #{hgnn_layer_forward.4} parent=0 // pred_fallthru
    _
  %v11 = vld [vmem:[%s0] sm:$0xff]
  %v12 = vld [vmem:[%s0 + $0x8] sm:$0xff]
  %v13 = vld [vmem:[%s0 + $0x10] sm:$0xff]
  %v14 = vld [vmem:[%s0 + $0x18] sm:$0xff]
  %v15 = vld [vmem:[%s0 + $0x20] sm:$0xff]
  %v16 = vld [vmem:[%s0 + $0x28] sm:$0xff]
  %v17 = vld [vmem:[%s0 + $0x30] sm:$0xff]
  %v18 = vld [vmem:[%s0 + $0x38] sm:$0xff]
  %v19 = vld [vmem:[%s0 + $0x40] sm:$0xff]
  %v20 = vld [vmem:[%s0 + $0x48] sm:$0xff]
  %v21 = vld [vmem:[%s0 + $0x50] sm:$0xff]
  %v22 = vld [vmem:[%s0 + $0x58] sm:$0xff]
  %v23 = vld [vmem:[%s0 + $0x60] sm:$0xff]
  %v24 = vld [vmem:[%s0 + $0x68] sm:$0xff]
  %v25 = vld [vmem:[%s0 + $0x70] sm:$0xff]
  %v26 = vld [vmem:[%s0 + $0x78] sm:$0xff]
  %v27 = vld [vmem:[%s0 + $0x80] sm:$0xff]
  %v28 = vld [vmem:[%s0 + $0x88] sm:$0xff]
  %v29 = vld [vmem:[%s0 + $0x90] sm:$0xff]
  %v30 = vld [vmem:[%s0 + $0x98] sm:$0xff]
  %v31 = vld [vmem:[%s0 + $0xa0] sm:$0xff]
  %v32 = vld [vmem:[%s0 + $0xa8] sm:$0xff]
  %v33 = vld [vmem:[%s0 + $0xb0] sm:$0xff]
  %v34 = vld [vmem:[%s0 + $0xb8] sm:$0xff]
  %v35 = vld [vmem:[%s0 + $0xc0] sm:$0xff]
  %v36 = vld [vmem:[%s1] sm:$0xff]
  %v37 = vld [vmem:[%s1 + $0x8] sm:$0xff]
  %v38 = vld [vmem:[%s1 + $0x10] sm:$0xff]
  %v39 = vld [vmem:[%s1 + $0x18] sm:$0xff]
  %v40 = vld [vmem:[%s1 + $0x20] sm:$0xff]
  %v41 = vld [vmem:[%s1 + $0x28] sm:$0xff]
  %v42 = vld [vmem:[%s1 + $0x30] sm:$0xff]
  %v43 = vld [vmem:[%s1 + $0x38] sm:$0xff]
  %v44 = vld [vmem:[%s1 + $0x40] sm:$0xff]
  %v45 = vld [vmem:[%s1 + $0x48] sm:$0xff]
  %v46 = vld [vmem:[%s1 + $0x50] sm:$0xff]
  %v47 = vld [vmem:[%s1 + $0x58] sm:$0xff]
  %v48 = vld [vmem:[%s1 + $0x60] sm:$0xff]
  %v49 = vld [vmem:[%s1 + $0x68] sm:$0xff]
  %v50 = vld [vmem:[%s1 + $0x70] sm:$0xff]
  %v51 = vld [vmem:[%s1 + $0x78] sm:$0xff]
  %52 = vmatprep.subr.mxu0 0.0
  %53 = vmatpush1.msra.mxu0 %v36
  %54 = vmatprep.subr.mxu0 0.0
  %55 = vmatpush1.msra.mxu0 %v37
  %56 = vmatprep.subr.mxu0 0.0
  %57 = vmatpush1.msra.mxu0 %v38
  %58 = vmatprep.subr.mxu0 0.0
  %59 = vmatpush1.msra.mxu0 %v39
  %60 = vmatprep.subr.mxu0 0.0
  %61 = vmatpush1.msra.mxu0 %v40
  %62 = vmatprep.subr.mxu0 0.0
  %63 = vmatpush1.msra.mxu0 %v41
  %64 = vmatprep.subr.mxu0 0.0
  %65 = vmatpush1.msra.mxu0 %v42
  %66 = vmatprep.subr.mxu0 0.0
  %67 = vmatpush1.msra.mxu0 %v43
  %68 = vmatprep.subr.mxu0 0.0
  %69 = vmatpush1.msra.mxu0 %v44
  %70 = vmatprep.subr.mxu0 0.0
  %71 = vmatpush1.msra.mxu0 %v45
  %72 = vmatprep.subr.mxu0 0.0
  %73 = vmatpush1.msra.mxu0 %v46
  %74 = vmatprep.subr.mxu0 0.0
  %75 = vmatpush1.msra.mxu0 %v47
  %76 = vmatprep.subr.mxu0 0.0
  %77 = vmatpush1.msra.mxu0 %v48
  %78 = vmatprep.subr.mxu0 0.0
  %79 = vmatpush1.msra.mxu0 %v49
  %80 = vmatprep.subr.mxu0 0.0
  %81 = vmatpush1.msra.mxu0 %v50
  %82 = vmatprep.subr.mxu0 0.0
  %83 = vmatpush1.msra.mxu0 %v51
  %84 = vmatprep.subr.mxu0 0.0
  %85 = vmatpush1.msra.mxu0 0.0
  %86 = vmatprep.subr.mxu0 0.0
  %87 = vmatpush1.msra.mxu0 0.0
  %88 = vmatprep.subr.mxu0 0.0
  %89 = vmatpush1.msra.mxu0 0.0
  %90 = vmatprep.subr.mxu0 0.0
  %91 = vmatpush1.msra.mxu0 0.0
  %92 = vmatprep.subr.mxu0 0.0
  %93 = vmatpush1.msra.mxu0 0.0
  %94 = vmatprep.subr.mxu0 0.0
  %95 = vmatpush1.msra.mxu0 0.0
  %96 = vmatprep.subr.mxu0 0.0
  %97 = vmatpush1.msra.mxu0 0.0
  %98 = vmatprep.subr.mxu0 0.0
  %99 = vmatpush1.msra.mxu0 0.0
  %100 = vmatprep.subr.mxu0 0.0
  %101 = vmatpush1.msra.mxu0 0.0
  %102 = vmatprep.subr.mxu0 0.0
  %103 = vmatpush1.msra.mxu0 0.0
  %104 = vmatprep.subr.mxu0 0.0
  %105 = vmatpush1.msra.mxu0 0.0
  %106 = vmatprep.subr.mxu0 0.0
  %107 = vmatpush1.msra.mxu0 0.0
  %108 = vmatprep.subr.mxu0 0.0
  %109 = vmatpush1.msra.mxu0 0.0
  %110 = vmatprep.subr.mxu0 0.0
  %111 = vmatpush1.msra.mxu0 0.0
  %112 = vmatprep.subr.mxu0 0.0
  %113 = vmatpush1.msra.mxu0 0.0
  %114 = vmatprep.subr.mxu0 0.0
  %115 = vmatpush1.msra.mxu0 0.0
  %116 = vmatprep.mubr.f32.mxu0 0.0
  %117 = vmatmul.mubr.f32.gmra.mrb[0].mxu0 %v11
  %v118 = vpop.f32.mrb[0].mxu0
  %v119 = vadd.f32 0.0, %v118
  %v120 = vpop.f32.mrb[0].mxu0
  %121 = vmatprep.mubr.f32.mxu0 0.0
  %122 = vmatmul.mubr.f32.gmra.mrb[0].mxu0 %v12
  %v123 = vpop.f32.mrb[0].mxu0
  %v124 = vadd.f32 0.0, %v123
  %v125 = vpop.f32.mrb[0].mxu0
  %126 = vmatprep.mubr.f32.mxu0 0.0
  %127 = vmatmul.mubr.f32.gmra.mrb[0].mxu0 %v13
  %v128 = vpop.f32.mrb[0].mxu0
  %v129 = vadd.f32 0.0, %v128
  %v130 = vpop.f32.mrb[0].mxu0
  %131 = vmatprep.mubr.f32.mxu0 0.0
  %132 = vmatmul.mubr.f32.gmra.mrb[0].mxu0 %v14
  %v133 = vpop.f32.mrb[0].mxu0
  %v134 = vadd.f32 0.0, %v133
  %v135 = vpop.f32.mrb[0].mxu0
  %136 = vmatprep.mubr.f32.mxu0 0.0
  %137 = vmatmul.mubr.f32.gmra.mrb[0].mxu0 %v15
  %v138 = vpop.f32.mrb[0].mxu0
  %v139 = vadd.f32 0.0, %v138
  %v140 = vpop.f32.mrb[0].mxu0
  %141 = vmatprep.mubr.f32.mxu0 0.0
  %142 = vmatmul.mubr.f32.gmra.mrb[0].mxu0 %v16
  %v143 = vpop.f32.mrb[0].mxu0
  %v144 = vadd.f32 0.0, %v143
  %v145 = vpop.f32.mrb[0].mxu0
  %146 = vmatprep.mubr.f32.mxu0 0.0
  %147 = vmatmul.mubr.f32.gmra.mrb[0].mxu0 %v17
  %v148 = vpop.f32.mrb[0].mxu0
  %v149 = vadd.f32 0.0, %v148
  %v150 = vpop.f32.mrb[0].mxu0
  %151 = vmatprep.mubr.f32.mxu0 0.0
  %152 = vmatmul.mubr.f32.gmra.mrb[0].mxu0 %v18
  %v153 = vpop.f32.mrb[0].mxu0
  %v154 = vadd.f32 0.0, %v153
  %v155 = vpop.f32.mrb[0].mxu0
  %156 = vmatprep.mubr.f32.mxu0 0.0
  %157 = vmatmul.mubr.f32.gmra.mrb[0].mxu0 %v19
  %v158 = vpop.f32.mrb[0].mxu0
  %v159 = vadd.f32 0.0, %v158
  %v160 = vpop.f32.mrb[0].mxu0
  %161 = vmatprep.mubr.f32.mxu0 0.0
  %162 = vmatmul.mubr.f32.gmra.mrb[0].mxu0 %v20
  %v163 = vpop.f32.mrb[0].mxu0
  %v164 = vadd.f32 0.0, %v163
  %v165 = vpop.f32.mrb[0].mxu0
  %166 = vmatprep.mubr.f32.mxu0 0.0
  %167 = vmatmul.mubr.f32.gmra.mrb[0].mxu0 %v21
  %v168 = vpop.f32.mrb[0].mxu0
  %v169 = vadd.f32 0.0, %v168
  %v170 = vpop.f32.mrb[0].mxu0
  %171 = vmatprep.mubr.f32.mxu0 0.0
  %172 = vmatmul.mubr.f32.gmra.mrb[0].mxu0 %v22
  %v173 = vpop.f32.mrb[0].mxu0
  %v174 = vadd.f32 0.0, %v173
  %v175 = vpop.f32.mrb[0].mxu0
  %176 = vmatprep.mubr.f32.mxu0 0.0
  %177 = vmatmul.mubr.f32.gmra.mrb[0].mxu0 %v23
  %v178 = vpop.f32.mrb[0].mxu0
  %v179 = vadd.f32 0.0, %v178
  %v180 = vpop.f32.mrb[0].mxu0
  %181 = vmatprep.mubr.f32.mxu0 0.0
  %182 = vmatmul.mubr.f32.gmra.mrb[0].mxu0 %v24
  %v183 = vpop.f32.mrb[0].mxu0
  %v184 = vadd.f32 0.0, %v183
  %v185 = vpop.f32.mrb[0].mxu0
  %186 = vmatprep.mubr.f32.mxu0 0.0
  %187 = vmatmul.mubr.f32.gmra.mrb[0].mxu0 %v25
  %v188 = vpop.f32.mrb[0].mxu0
  %v189 = vadd.f32 0.0, %v188
  %v190 = vpop.f32.mrb[0].mxu0
  %191 = vmatprep.mubr.f32.mxu0 0.0
  %192 = vmatmul.mubr.f32.gmra.mrb[0].mxu0 %v26
  %v193 = vpop.f32.mrb[0].mxu0
  %v194 = vadd.f32 0.0, %v193
  %v195 = vpop.f32.mrb[0].mxu0
  %196 = vmatprep.mubr.f32.mxu0 0.0
  %197 = vmatmul.mubr.f32.gmra.mrb[0].mxu0 %v27
  %v198 = vpop.f32.mrb[0].mxu0
  %v199 = vadd.f32 0.0, %v198
  %v200 = vpop.f32.mrb[0].mxu0
  %201 = vmatprep.mubr.f32.mxu0 0.0
  %202 = vmatmul.mubr.f32.gmra.mrb[0].mxu0 %v28
  %v203 = vpop.f32.mrb[0].mxu0
  %v204 = vadd.f32 0.0, %v203
  %v205 = vpop.f32.mrb[0].mxu0
  %206 = vmatprep.mubr.f32.mxu0 0.0
  %207 = vmatmul.mubr.f32.gmra.mrb[0].mxu0 %v29
  %v208 = vpop.f32.mrb[0].mxu0
  %v209 = vadd.f32 0.0, %v208
  %v210 = vpop.f32.mrb[0].mxu0
  %211 = vmatprep.mubr.f32.mxu0 0.0
  %212 = vmatmul.mubr.f32.gmra.mrb[0].mxu0 %v30
  %v213 = vpop.f32.mrb[0].mxu0
  %v214 = vadd.f32 0.0, %v213
  %v215 = vpop.f32.mrb[0].mxu0
  %216 = vmatprep.mubr.f32.mxu0 0.0
  %217 = vmatmul.mubr.f32.gmra.mrb[0].mxu0 %v31
  %v218 = vpop.f32.mrb[0].mxu0
  %v219 = vadd.f32 0.0, %v218
  %v220 = vpop.f32.mrb[0].mxu0
  %221 = vmatprep.mubr.f32.mxu0 0.0
  %222 = vmatmul.mubr.f32.gmra.mrb[0].mxu0 %v32
  %v223 = vpop.f32.mrb[0].mxu0
  %v224 = vadd.f32 0.0, %v223
  %v225 = vpop.f32.mrb[0].mxu0
  %226 = vmatprep.mubr.f32.mxu0 0.0
  %227 = vmatmul.mubr.f32.gmra.mrb[0].mxu0 %v33
  %v228 = vpop.f32.mrb[0].mxu0
  %v229 = vadd.f32 0.0, %v228
  %v230 = vpop.f32.mrb[0].mxu0
  %231 = vmatprep.mubr.f32.mxu0 0.0
  %232 = vmatmul.mubr.f32.gmra.mrb[0].mxu0 %v34
  %v233 = vpop.f32.mrb[0].mxu0
  %v234 = vadd.f32 0.0, %v233
  %v235 = vpop.f32.mrb[0].mxu0
  %236 = vmatprep.mubr.f32.mxu0 0.0
  %237 = vmatmul.mubr.f32.gmra.mrb[0].mxu0 %v35
  %v238 = vpop.f32.mrb[0].mxu0
  %v239 = vadd.f32 0.0, %v238
  %v240 = vpop.f32.mrb[0].mxu0
  %241 = vdwg.mxu0
  %242 = vst [vmem:[%s2] sm:$0xff] %v119
  %243 = vst [vmem:[%s2 + $0x8] sm:$0xff] %v124
  %244 = vst [vmem:[%s2 + $0x10] sm:$0xff] %v129
  %245 = vst [vmem:[%s2 + $0x18] sm:$0xff] %v134
  %246 = vst [vmem:[%s2 + $0x20] sm:$0xff] %v139
  %247 = vst [vmem:[%s2 + $0x28] sm:$0xff] %v144
  %248 = vst [vmem:[%s2 + $0x30] sm:$0xff] %v149
  %249 = vst [vmem:[%s2 + $0x38] sm:$0xff] %v154
  %250 = vst [vmem:[%s2 + $0x40] sm:$0xff] %v159
  %251 = vst [vmem:[%s2 + $0x48] sm:$0xff] %v164
  %252 = vst [vmem:[%s2 + $0x50] sm:$0xff] %v169
  %253 = vst [vmem:[%s2 + $0x58] sm:$0xff] %v174
  %254 = vst [vmem:[%s2 + $0x60] sm:$0xff] %v179
  %255 = vst [vmem:[%s2 + $0x68] sm:$0xff] %v184
  %256 = vst [vmem:[%s2 + $0x70] sm:$0xff] %v189
  %257 = vst [vmem:[%s2 + $0x78] sm:$0xff] %v194
  %258 = vst [vmem:[%s2 + $0x80] sm:$0xff] %v199
  %259 = vst [vmem:[%s2 + $0x88] sm:$0xff] %v204
  %260 = vst [vmem:[%s2 + $0x90] sm:$0xff] %v209
  %261 = vst [vmem:[%s2 + $0x98] sm:$0xff] %v214
  %262 = vst [vmem:[%s2 + $0xa0] sm:$0xff] %v219
  %263 = vst [vmem:[%s2 + $0xa8] sm:$0xff] %v224
  %264 = vst [vmem:[%s2 + $0xb0] sm:$0xff] %v229
  %265 = vst [vmem:[%s2 + $0xb8] sm:$0xff] %v234
  %266 = vst [vmem:[%s2 + $0xc0] sm:$0xff] %v239
  // Predicated region
  $region10: #{hgnn_layer_forward.4} parent=0 // pred_check
    _
  $region11: #{hgnn_layer_forward.4} parent=0 // pred_check_branch
    %268 = sbr.rel (0) target = $region13
  $region12: #{hgnn_layer_forward.4} parent=0 // pred_region
    _
  $region13: #{hgnn_layer_forward.4} parent=0 // pred_fallthru
    _
  // Predicated region
  $region14: #{hgnn_layer_forward.4} parent=0 // pred_check
    _
  $region15: #{hgnn_layer_forward.4} parent=0 // pred_check_branch
    %270 = sbr.rel (0) target = $region17
  $region16: #{hgnn_layer_forward.4} parent=0 // pred_region
    _
  $region17: #{hgnn_layer_forward.4} parent=0 // pred_fallthru
    _

</llo_original>
